<compile_context>
chip_gen: v5e
topology: v5e:2x2
jax: 0.10.0
libtpu: 0.0.40
codegen_flags: <defaults>
</compile_context>

<pallas_src>
import jax
import jax.numpy as jnp
from jax.experimental import pallas as pl
from jax.experimental.pallas import tpu as pltpu


def _leaky_relu(x, slope=0.2):
    # mul + max (2 VALU ops) instead of compare + select + mul.
    return jnp.maximum(x, slope * x)


def disc_kernel(x_ref, w1_ref, b1_ref, w2_ref, b2_ref, w3_ref, b3_ref, o_ref):
    # Layer 1: Linear(in_dim -> hidden).  bf16 MXU, f32 accumulate, bf16 epilogue.
    x = x_ref[...].astype(jnp.bfloat16)          # no-op when x is already bf16
    h = jnp.dot(x, w1_ref[...], preferred_element_type=jnp.float32) + b1_ref[...]
    h = _leaky_relu(h.astype(jnp.bfloat16))      # single cast, activation in bf16

    # Layer 2: Linear(hidden -> hidden).  Dominant matmul; bf16 feeds the MXU directly.
    h = jnp.dot(h, w2_ref[...], preferred_element_type=jnp.float32) + b2_ref[...]
    h = _leaky_relu(h.astype(jnp.bfloat16))

    # Layer 3: Linear(hidden -> 1) + Sigmoid, produced directly as a lane-dense
    # (1, block_b) row:  logit[0, b] = sum_k w3[0, k] * h[b, k].  bf16 operands halve the
    # h-transpose traffic vs the previous f32 einsum; accumulate in f32.
    logit = jnp.einsum("ok,bk->ob", w3_ref[...], h,
                       preferred_element_type=jnp.float32) + b3_ref[...]
    sig = 1.0 / (1.0 + jnp.exp(-logit))          # exact sigmoid: stays in [0, 1]
    o_ref[...] = sig[None].astype(o_ref.dtype)   # (1, 1, block_b)


def _round_up(a, m):
    return (a + m - 1) // m * m


def _choose_block_b(B, in_dim, hidden, requested=None, vmem_budget=40 << 20):
    if requested is None:
        # Per-row VMEM bytes: double-buffered bf16 x tile + (f32 + bf16) h intermediates
        # + double-buffered f32 output lane.
        per_row = 2 * in_dim * 2 + 3 * hidden * 4 + 2 * 4
        block_b = min(8192, max(128, (vmem_budget // per_row) // 128 * 128))
    else:
        block_b = requested
    # Lane-dense output row: block_b must be a multiple of 128.
    block_b = max(128, _round_up(block_b, 128))
    # Keep >= 2 grid steps when the batch allows it (v7x has 2 TensorCores).
    if B > 128:
        block_b = min(block_b, _round_up(pl.cdiv(B, 2), 128))
    # Never larger than the padded batch.
    block_b = min(block_b, _round_up(B, 128))
    return block_b


def alpha_discriminator(x, params, *, block_b=None):
    """x: (B, input_dim), bf16 preferred (f32 accepted) -> (B, 1) f32 probabilities."""
    w1, b1, w2, b2, w3, b3 = params
    B, in_dim = x.shape
    hidden = w1.shape[1]

    block_b = _choose_block_b(B, in_dim, hidden, block_b)
    B_pad = _round_up(B, block_b)
    if B_pad != B:
        x = jnp.pad(x, ((0, B_pad - B), (0, 0)))
    num_blocks = B_pad // block_b

    # VMEM limit derived from the actual tiles, capped at 48 MiB (safe on v7x's 64 MiB).
    x_bytes = x.dtype.itemsize
    est = (2 * block_b * in_dim * x_bytes          # double-buffered x tile
           + 2 * block_b * 4                        # double-buffered f32 output row
           + 4 * block_b * hidden * 4               # f32/bf16 intermediates + headroom
           + (in_dim * hidden + hidden * hidden + hidden) * 2
           + (2 * hidden + 2) * 4)
    vmem_limit = int(min(48 << 20, max(32 << 20, 2 * est)))

    def full(shape):
        # Weights/biases are small: every grid step sees the full tensor.
        return pl.BlockSpec(shape, lambda i, _s=shape: tuple(0 for _ in _s))

    out3 = pl.pallas_call(
        disc_kernel,
        out_shape=jax.ShapeDtypeStruct((num_blocks, 1, block_b), jnp.float32),
        grid_spec=pltpu.PrefetchScalarGridSpec(
            num_scalar_prefetch=0,
            grid=(num_blocks,),
            in_specs=[
                pl.BlockSpec((block_b, in_dim), lambda i: (i, 0)),  # x tile (pipelined)
                full(w1.shape), full(b1.shape),
                full(w2.shape), full(b2.shape),
                full(w3.shape), full(b3.shape),
            ],
            out_specs=pl.BlockSpec((1, 1, block_b), lambda i: (i, 0, 0)),
        ),
        compiler_params=pltpu.CompilerParams(
            # "parallel" lets the batch axis shard across v7x's two TensorCores.
            dimension_semantics=("parallel",),
            vmem_limit_bytes=vmem_limit,
        ),
    )(x, w1, b1, w2, b2, w3, b3)

    # (num_blocks, 1, block_b): tile i / lane j is batch row i*block_b + j  ->  (B, 1).
    return out3.reshape(B_pad, 1)[:B]


def init_params(key, input_dim, hidden_dim=128):
    """PyTorch nn.Linear-style uniform(-1/sqrt(fan_in), 1/sqrt(fan_in)) init.

    w1/w2 stored (in_features, out_features) bf16 (MXU-native); w3 stored (1, hidden)
    bf16 (consumed by the kernel's lane-dense contraction); biases f32, 2-D.
    """
    ks = jax.random.split(key, 6)

    def lin(kw, kb, fan_in, fan_out):
        bound = 1.0 / jnp.sqrt(jnp.float32(fan_in))
        w = jax.random.uniform(kw, (fan_in, fan_out), jnp.float32, -bound, bound)
        b = jax.random.uniform(kb, (1, fan_out), jnp.float32, -bound, bound)
        return w, b

    w1, b1 = lin(ks[0], ks[1], input_dim, hidden_dim)
    w2, b2 = lin(ks[2], ks[3], hidden_dim, hidden_dim)
    w3t, b3 = lin(ks[4], ks[5], hidden_dim, 1)                   # (hidden, 1), (1, 1)
    return (w1.astype(jnp.bfloat16), b1,
            w2.astype(jnp.bfloat16), b2,
            jnp.transpose(w3t).astype(jnp.bfloat16), b3)          # w3: (1, hidden) bf16


def reference(x, params):
    """f32 reference using the same (bf16-quantized) weights."""
    w1, b1, w2, b2, w3, b3 = params
    xf = x.astype(jnp.float32)
    h = jnp.maximum(h_ := xf @ w1.astype(jnp.float32) + b1, 0.2 * h_)
    h = jnp.maximum(h2 := h @ w2.astype(jnp.float32) + b2, 0.2 * h2)
    return jax.nn.sigmoid(h @ w3.astype(jnp.float32).T + b3)


if __name__ == "__main__":
    key = jax.random.PRNGKey(0)
    k_x, k_p, k_x2 = jax.random.split(key, 3)

    input_dim, hidden_dim = 16, 128
    params = init_params(k_p, input_dim, hidden_dim)

    # Small ragged batch: single grid step, padding path.
    B1 = 48
    x1 = jax.random.normal(k_x, (B1, input_dim), jnp.float32).astype(jnp.bfloat16)
    out1 = jax.block_until_ready(alpha_discriminator(x1, params))
    ref1 = reference(x1, params)
    assert out1.shape == (B1, 1), out1.shape
    assert jnp.allclose(out1, ref1, atol=5e-2, rtol=5e-2), float(jnp.max(jnp.abs(out1 - ref1)))

    # Larger batch: exercises the >=2-block clamp (multi-step pipelined grid) + padding.
    B2 = 320
    x2 = jax.random.normal(k_x2, (B2, input_dim), jnp.float32).astype(jnp.bfloat16)
    out2 = jax.block_until_ready(alpha_discriminator(x2, params))
    ref2 = reference(x2, params)
    assert out2.shape == (B2, 1), out2.shape
    assert jnp.allclose(out2, ref2, atol=5e-2, rtol=5e-2), float(jnp.max(jnp.abs(out2 - ref2)))

    print("KERNEL_OK")
</pallas_src>

<mosaic_0001>
module attributes {stable_mosaic.version = 11 : i64} {
  func.func @disc_kernel(%arg0: i32, %arg1: memref<128x16xbf16, #tpu.memory_space<vmem>>, %arg2: memref<16x128xbf16, #tpu.memory_space<vmem>>, %arg3: memref<1x128xf32, #tpu.memory_space<vmem>>, %arg4: memref<128x128xbf16, #tpu.memory_space<vmem>>, %arg5: memref<1x128xf32, #tpu.memory_space<vmem>>, %arg6: memref<1x128xbf16, #tpu.memory_space<vmem>>, %arg7: memref<1x1xf32, #tpu.memory_space<vmem>>, %arg8: memref<1x1x128xf32, #tpu.memory_space<vmem>>) attributes {dimension_semantics = [#tpu.dimension_semantics<parallel>], iteration_bounds = array<i64: 1>, scalar_prefetch = 0 : i64, scratch_operands = 0 : i64, tpu.core_type = #tpu.core_type<tc>, window_params = [{transform_indices = @transform_0, window_bounds = array<i64: 128, 16>}, {pipeline_mode = #tpu.pipeline_mode<synchronous>, transform_indices = @transform_1, window_bounds = array<i64: 16, 128>}, {pipeline_mode = #tpu.pipeline_mode<synchronous>, transform_indices = @transform_2, window_bounds = array<i64: 1, 128>}, {pipeline_mode = #tpu.pipeline_mode<synchronous>, transform_indices = @transform_3, window_bounds = array<i64: 128, 128>}, {pipeline_mode = #tpu.pipeline_mode<synchronous>, transform_indices = @transform_4, window_bounds = array<i64: 1, 128>}, {pipeline_mode = #tpu.pipeline_mode<synchronous>, transform_indices = @transform_5, window_bounds = array<i64: 1, 128>}, {pipeline_mode = #tpu.pipeline_mode<synchronous>, transform_indices = @transform_6, window_bounds = array<i64: 1, 1>}, {transform_indices = @transform_7, window_bounds = array<i64: 1, 1, 128>}]} {
    %c0 = arith.constant 0 : index
    %c0_0 = arith.constant 0 : index
    %0 = vector.load %arg1[%c0, %c0_0] : memref<128x16xbf16, #tpu.memory_space<vmem>>, vector<128x16xbf16>
    %c0_1 = arith.constant 0 : index
    %c0_2 = arith.constant 0 : index
    %1 = vector.load %arg2[%c0_1, %c0_2] : memref<16x128xbf16, #tpu.memory_space<vmem>>, vector<16x128xbf16>
    %cst = arith.constant dense<0.000000e+00> : vector<128x128xf32>
    %2 = tpu.matmul %0, %1, %cst {dimension_numbers = #tpu.dot_dimension_numbers<[1], [0], [0], [1], [0, 0, 1, 1], [], []>} : vector<128x16xbf16>, vector<16x128xbf16>, vector<128x128xf32> -> vector<128x128xf32>
    %c0_3 = arith.constant 0 : index
    %c0_4 = arith.constant 0 : index
    %3 = vector.load %arg3[%c0_3, %c0_4] : memref<1x128xf32, #tpu.memory_space<vmem>>, vector<1x128xf32>
    %4 = vector.broadcast %3 : vector<1x128xf32> to vector<128x128xf32>
    %5 = arith.addf %2, %4 : vector<128x128xf32>
    %6 = arith.truncf %5 : vector<128x128xf32> to vector<128x128xbf16>
    %cst_5 = arith.constant 2.001950e-01 : bf16
    %7 = vector.broadcast %cst_5 : bf16 to vector<128x128xbf16>
    %8 = arith.mulf %7, %6 : vector<128x128xbf16>
    %9 = arith.maximumf %6, %8 : vector<128x128xbf16>
    %c0_6 = arith.constant 0 : index
    %c0_7 = arith.constant 0 : index
    %10 = vector.load %arg4[%c0_6, %c0_7] : memref<128x128xbf16, #tpu.memory_space<vmem>>, vector<128x128xbf16>
    %cst_8 = arith.constant dense<0.000000e+00> : vector<128x128xf32>
    %11 = tpu.matmul %9, %10, %cst_8 {dimension_numbers = #tpu.dot_dimension_numbers<[1], [0], [0], [1], [0, 0, 1, 1], [], []>} : vector<128x128xbf16>, vector<128x128xbf16>, vector<128x128xf32> -> vector<128x128xf32>
    %c0_9 = arith.constant 0 : index
    %c0_10 = arith.constant 0 : index
    %12 = vector.load %arg5[%c0_9, %c0_10] : memref<1x128xf32, #tpu.memory_space<vmem>>, vector<1x128xf32>
    %13 = vector.broadcast %12 : vector<1x128xf32> to vector<128x128xf32>
    %14 = arith.addf %11, %13 : vector<128x128xf32>
    %15 = arith.truncf %14 : vector<128x128xf32> to vector<128x128xbf16>
    %cst_11 = arith.constant 2.001950e-01 : bf16
    %16 = vector.broadcast %cst_11 : bf16 to vector<128x128xbf16>
    %17 = arith.mulf %16, %15 : vector<128x128xbf16>
    %18 = arith.maximumf %15, %17 : vector<128x128xbf16>
    %c0_12 = arith.constant 0 : index
    %c0_13 = arith.constant 0 : index
    %19 = vector.load %arg6[%c0_12, %c0_13] : memref<1x128xbf16, #tpu.memory_space<vmem>>, vector<1x128xbf16>
    "tpu.trace_start"() <{level = 10 : i32, message = "ok,bk->ob"}> : () -> ()
    %cst_14 = arith.constant dense<0.000000e+00> : vector<1x128xf32>
    %20 = tpu.matmul %19, %18, %cst_14 {dimension_numbers = #tpu.dot_dimension_numbers<[1], [1], [0], [0], [0, 0, 1, 0], [], []>} : vector<1x128xbf16>, vector<128x128xbf16>, vector<1x128xf32> -> vector<1x128xf32>
    "tpu.trace_stop"() : () -> ()
    %c0_15 = arith.constant 0 : index
    %c0_16 = arith.constant 0 : index
    %21 = vector.load %arg7[%c0_15, %c0_16] : memref<1x1xf32, #tpu.memory_space<vmem>>, vector<1x1xf32>
    %22 = vector.broadcast %21 : vector<1x1xf32> to vector<1x128xf32>
    %23 = arith.addf %20, %22 : vector<1x128xf32>
    %cst_17 = arith.constant 0.000000e+00 : f32
    %24 = vector.broadcast %cst_17 : f32 to vector<1x128xf32>
    %25 = arith.subf %24, %23 : vector<1x128xf32>
    %26 = math.exp %25 : vector<1x128xf32>
    %cst_18 = arith.constant 1.000000e+00 : f32
    %27 = vector.broadcast %cst_18 : f32 to vector<1x128xf32>
    %28 = arith.addf %27, %26 : vector<1x128xf32>
    %cst_19 = arith.constant 1.000000e+00 : f32
    %29 = vector.broadcast %cst_19 : f32 to vector<1x128xf32>
    %30 = arith.divf %29, %28 : vector<1x128xf32>
    %31 = vector.shape_cast %30 : vector<1x128xf32> to vector<1x1x128xf32>
    %c0_20 = arith.constant 0 : index
    %c0_21 = arith.constant 0 : index
    %c0_22 = arith.constant 0 : index
    %32 = vector.load %arg8[%c0_20, %c0_21, %c0_22] : memref<1x1x128xf32, #tpu.memory_space<vmem>>, vector<1x1x128xf32>
    tpu.vector_store %arg8[%c0_20, %c0_21, %c0_22], %31 {strides = array<i32>} : memref<1x1x128xf32, #tpu.memory_space<vmem>>, vector<1x1x128xf32>,
    return
  }
  func.func @transform_0(%arg0: i32) -> (i32, i32) {
    %c0_i32 = arith.constant 0 : i32
    %c0_i32_0 = arith.constant 0 : i32
    return %arg0, %c0_i32 : i32, i32
  }
  func.func @transform_1(%arg0: i32) -> (i32, i32) {
    %c0_i32 = arith.constant 0 : i32
    %c0_i32_0 = arith.constant 0 : i32
    %c0_i32_1 = arith.constant 0 : i32
    return %c0_i32, %c0_i32_0 : i32, i32
  }
  func.func @transform_2(%arg0: i32) -> (i32, i32) {
    %c0_i32 = arith.constant 0 : i32
    %c0_i32_0 = arith.constant 0 : i32
    %c0_i32_1 = arith.constant 0 : i32
    return %c0_i32, %c0_i32_0 : i32, i32
  }
  func.func @transform_3(%arg0: i32) -> (i32, i32) {
    %c0_i32 = arith.constant 0 : i32
    %c0_i32_0 = arith.constant 0 : i32
    %c0_i32_1 = arith.constant 0 : i32
    return %c0_i32, %c0_i32_0 : i32, i32
  }
  func.func @transform_4(%arg0: i32) -> (i32, i32) {
    %c0_i32 = arith.constant 0 : i32
    %c0_i32_0 = arith.constant 0 : i32
    %c0_i32_1 = arith.constant 0 : i32
    return %c0_i32, %c0_i32_0 : i32, i32
  }
  func.func @transform_5(%arg0: i32) -> (i32, i32) {
    %c0_i32 = arith.constant 0 : i32
    %c0_i32_0 = arith.constant 0 : i32
    %c0_i32_1 = arith.constant 0 : i32
    return %c0_i32, %c0_i32_0 : i32, i32
  }
  func.func @transform_6(%arg0: i32) -> (i32, i32) {
    %c0_i32 = arith.constant 0 : i32
    %c0_i32_0 = arith.constant 0 : i32
    %c0_i32_1 = arith.constant 0 : i32
    return %c0_i32, %c0_i32_0 : i32, i32
  }
  func.func @transform_7(%arg0: i32) -> (i32, i32, i32) {
    %c0_i32 = arith.constant 0 : i32
    %c0_i32_0 = arith.constant 0 : i32
    %c0_i32_1 = arith.constant 0 : i32
    return %arg0, %c0_i32, %c0_i32_0 : i32, i32, i32
  }
}

</mosaic_0001>

<llo_original>
// kernel: tpu_custom_call.1
$region0: #{tpu_custom_call.1}
  #allocation0 [shape = 'u32[]', space=smem, size = 0x4, offset = 0x4, fixed_abs, tag = 'smem constant byte address 0x4 - core index']
  #allocation1 [shape = 'u32[72,128]{1,0:T(1,128)}', space=vmem, size = 0x9000, scoped, tag = 'internal scratch']
  #allocation2 [shape = 'f32[1,1]{1,0:T(1,128)S(1)}', space=vmem, size = 0x200, scoped, tag = 'scoped memory for tpu_custom_call.1']
  %s0 = inlined_call_operand.vmem [shape: bf16[128,16], index: 0, kind: input, shape index: {}]
  %s1 = inlined_call_operand.vmem [shape: bf16[16,128], index: 1, kind: input, shape index: {}]
  %s2 = inlined_call_operand.vmem [shape: f32[1,128], index: 2, kind: input, shape index: {}]
  %s3 = inlined_call_operand.vmem [shape: bf16[128,128], index: 3, kind: input, shape index: {}]
  %s4 = inlined_call_operand.vmem [shape: f32[1,128], index: 4, kind: input, shape index: {}]
  %s5 = inlined_call_operand.vmem [shape: bf16[1,128], index: 5, kind: input, shape index: {}]
  %s6 = inlined_call_operand.<no memory space> [shape: f32[1,1], index: 6, kind: input, shape index: {}]
  %s7 = inlined_call_operand.hbm [shape: f32[1,1,128], index: 7, kind: output, shape index: {}]
  %s8 = sld [smem:[#allocation0]]
  $region38: #{tpu_custom_call.1} parent=0
    _
  %s10 = ssub.s32 1, %s8
  %s11 = scalar_select 0, %s10, %s8
  %v12 = vstv %s6
  %13 = vst [vmem:[#allocation2] sm:$0x1] %v12
  $region1: #{tpu_custom_call.1} parent=0
    #allocation3 [shape = 'u8[512]{0}', space=vmem, size = 0x400, scoped, tag = 'output window, operand 0, single buffered']
    #allocation4 [shape = 's32[1]{0}', space=sflag, size = 0x4, scoped, tag = 'scoped memory for tpu_custom_call.1']
    %14 = vsyncpa [#allocation4], 0
    // Predicated region
    $region2: #{tpu_custom_call.1} parent=1 // pred_check
      _
    $region3: #{tpu_custom_call.1} parent=1 // pred_check_branch
      %16 = sbr.rel (0) target = $region5
    $region4: #{tpu_custom_call.1} parent=1 // pred_region
      _
    $region5: #{tpu_custom_call.1} parent=1 // pred_fallthru
      _
    // Predicated region
    $region6: #{tpu_custom_call.1} parent=1 // pred_check
      _
    $region7: #{tpu_custom_call.1} parent=1 // pred_check_branch
      %18 = sbr.rel (0) target = $region9
    $region8: #{tpu_custom_call.1} parent=1 // pred_region
      _
    $region9: #{tpu_custom_call.1} parent=1 // pred_fallthru
      _
    // Predicated region
    $region10: #{tpu_custom_call.1} parent=1 // pred_check
      _
    $region11: #{tpu_custom_call.1} parent=1 // pred_check_branch
      %20 = sbr.rel (0) target = $region13
    $region12: #{tpu_custom_call.1} parent=1 // pred_region
      _
    $region13: #{tpu_custom_call.1} parent=1 // pred_fallthru
      _
    // Predicated region
    $region14: #{tpu_custom_call.1} parent=1 // pred_check
      _
    $region15: #{tpu_custom_call.1} parent=1 // pred_check_branch
      %22 = sbr.rel (0) target = $region17
    $region16: #{tpu_custom_call.1} parent=1 // pred_region
      _
    $region17: #{tpu_custom_call.1} parent=1 // pred_fallthru
      _
    // Predicated region
    $region18: #{tpu_custom_call.1} parent=1 // pred_check
      _
    $region19: #{tpu_custom_call.1} parent=1 // pred_check_branch
      %24 = sbr.rel (0) target = $region21
    $region20: #{tpu_custom_call.1} parent=1 // pred_region
      _
    $region21: #{tpu_custom_call.1} parent=1 // pred_fallthru
      _
    // Predicated region
    $region22: #{tpu_custom_call.1} parent=1 // pred_check
      _
    $region23: #{tpu_custom_call.1} parent=1 // pred_check_branch
      %26 = sbr.rel (0) target = $region25
    $region24: #{tpu_custom_call.1} parent=1 // pred_region
      _
    $region25: #{tpu_custom_call.1} parent=1 // pred_fallthru
      _
    // Predicated region
    $region26: #{tpu_custom_call.1} parent=1 // pred_check
      _
    $region27: #{tpu_custom_call.1} parent=1 // pred_check_branch
      %28 = sbr.rel (0) target = $region29
    $region28: #{tpu_custom_call.1} parent=1 // pred_region
      _
    $region29: #{tpu_custom_call.1} parent=1 // pred_fallthru
      _
    %v30 = vld [vmem:[%s0] sm:$0xf]
    %v31 = vld [vmem:[%s0 + $0x4] sm:$0xf]
    %v32 = vld [vmem:[%s0 + $0x8] sm:$0xf]
    %v33 = vld [vmem:[%s0 + $0xc] sm:$0xf]
    %v34 = vld [vmem:[%s0 + $0x10] sm:$0xf]
    %v35 = vld [vmem:[%s0 + $0x14] sm:$0xf]
    %v36 = vld [vmem:[%s0 + $0x18] sm:$0xf]
    %v37 = vld [vmem:[%s0 + $0x1c] sm:$0xf]
    %v38 = vld [vmem:[%s0 + $0x20] sm:$0xf]
    %v39 = vld [vmem:[%s0 + $0x24] sm:$0xf]
    %v40 = vld [vmem:[%s0 + $0x28] sm:$0xf]
    %v41 = vld [vmem:[%s0 + $0x2c] sm:$0xf]
    %v42 = vld [vmem:[%s0 + $0x30] sm:$0xf]
    %v43 = vld [vmem:[%s0 + $0x34] sm:$0xf]
    %v44 = vld [vmem:[%s0 + $0x38] sm:$0xf]
    %v45 = vld [vmem:[%s0 + $0x3c] sm:$0xf]
    %v46 = vld [vmem:[%s1] sm:$0xf]
    %v47 = vld [vmem:[%s1 + $0x4] sm:$0xf]
    %v48 = vld [vmem:[%s2] sm:$0x1]
    %v50 = vperm.slane %v48, 0
    %v68 = vunpack.c.l.b16 %v30
    %v69 = vunpack.c.l.b16 %v31
    %v70 = vunpack.c.l.b16 %v32
    %v71 = vunpack.c.l.b16 %v33
    %v72 = vunpack.c.l.b16 %v34
    %v73 = vunpack.c.l.b16 %v35
    %v74 = vunpack.c.l.b16 %v36
    %v75 = vunpack.c.l.b16 %v37
    %v76 = vunpack.c.l.b16 %v38
    %v77 = vunpack.c.l.b16 %v39
    %v78 = vunpack.c.l.b16 %v40
    %v79 = vunpack.c.l.b16 %v41
    %v80 = vunpack.c.l.b16 %v42
    %v81 = vunpack.c.l.b16 %v43
    %v82 = vunpack.c.l.b16 %v44
    %v83 = vunpack.c.l.b16 %v45
    %v84 = vpack.c.b16 %v69, %v68
    %v85 = vpack.c.b16 %v71, %v70
    %v86 = vpack.c.b16 %v73, %v72
    %v87 = vpack.c.b16 %v75, %v74
    %v88 = vpack.c.b16 %v77, %v76
    %v89 = vpack.c.b16 %v79, %v78
    %v90 = vpack.c.b16 %v81, %v80
    %v91 = vpack.c.b16 %v83, %v82
    %v94 = vunpack.c.l.b16 %v46
    %v95 = vunpack.c.l.b16 %v47
    %v96 = vpack.c.b16 %v95, %v94
    %vm98 = vcmask 130048
    %v100 = vsel %vm98, %v84, 0
    %v103 = vsel %vm98, %v85, 0
    %v106 = vsel %vm98, %v86, 0
    %v109 = vsel %vm98, %v87, 0
    %v112 = vsel %vm98, %v88, 0
    %v115 = vsel %vm98, %v89, 0
    %v118 = vsel %vm98, %v90, 0
    %v121 = vsel %vm98, %v91, 0
    %123 = vmatpush.bf16.msra.mxu0 0
    %124 = vmatpush.bf16.msra.mxu0 0
    %125 = vmatpush.bf16.msra.mxu0 0
    %126 = vmatpush.bf16.msra.mxu0 0
    %127 = vmatpush.bf16.msra.mxu0 0
    %128 = vmatpush.bf16.msra.mxu0 0
    %129 = vmatpush.bf16.msra.mxu0 0
    %130 = vmatpush.bf16.msra.mxu0 %v96
    %131 = vmatmul.bf16.gmra.mxu0 %v100
    %v132 = vpop.f32.mrf.mxu0
    %v133 = vadd.f32 %v50, %v132
    %v134 = vpop.f32.mrf.mxu0
    %v135 = vadd.f32 %v50, %v134
    %136 = vmatmul.bf16.gmra.mxu0 %v103
    %v137 = vpop.f32.mrf.mxu0
    %v138 = vadd.f32 %v50, %v137
    %v139 = vpop.f32.mrf.mxu0
    %v140 = vadd.f32 %v50, %v139
    %141 = vmatmul.bf16.gmra.mxu0 %v106
    %v142 = vpop.f32.mrf.mxu0
    %v143 = vadd.f32 %v50, %v142
    %v144 = vpop.f32.mrf.mxu0
    %v145 = vadd.f32 %v50, %v144
    %146 = vmatmul.bf16.gmra.mxu0 %v109
    %v147 = vpop.f32.mrf.mxu0
    %v148 = vadd.f32 %v50, %v147
    %v149 = vpop.f32.mrf.mxu0
    %v150 = vadd.f32 %v50, %v149
    %151 = vmatmul.bf16.gmra.mxu0 %v112
    %v152 = vpop.f32.mrf.mxu0
    %v153 = vadd.f32 %v50, %v152
    %v154 = vpop.f32.mrf.mxu0
    %v155 = vadd.f32 %v50, %v154
    %156 = vmatmul.bf16.gmra.mxu0 %v115
    %v157 = vpop.f32.mrf.mxu0
    %v158 = vadd.f32 %v50, %v157
    %v159 = vpop.f32.mrf.mxu0
    %v160 = vadd.f32 %v50, %v159
    %161 = vmatmul.bf16.gmra.mxu0 %v118
    %v162 = vpop.f32.mrf.mxu0
    %v163 = vadd.f32 %v50, %v162
    %v164 = vpop.f32.mrf.mxu0
    %v165 = vadd.f32 %v50, %v164
    %166 = vmatmul.bf16.gmra.mxu0 %v121
    %v167 = vpop.f32.mrf.mxu0
    %v168 = vadd.f32 %v50, %v167
    %v169 = vpop.f32.mrf.mxu0
    %v170 = vadd.f32 %v50, %v169
    %171 = vdwg.mxu0
    %v172 = vpack.c.bf16 %v133, %v133
    %v173 = vpack.c.bf16 %v135, %v135
    %v174 = vpack.c.bf16 %v138, %v138
    %v175 = vpack.c.bf16 %v140, %v140
    %v176 = vpack.c.bf16 %v143, %v143
    %v177 = vpack.c.bf16 %v145, %v145
    %v178 = vpack.c.bf16 %v148, %v148
    %v179 = vpack.c.bf16 %v150, %v150
    %v180 = vpack.c.bf16 %v153, %v153
    %v181 = vpack.c.bf16 %v155, %v155
    %v182 = vpack.c.bf16 %v158, %v158
    %v183 = vpack.c.bf16 %v160, %v160
    %v184 = vpack.c.bf16 %v163, %v163
    %v185 = vpack.c.bf16 %v165, %v165
    %v186 = vpack.c.bf16 %v168, %v168
    %v187 = vpack.c.bf16 %v170, %v170
    %v188 = vunpack.c.l.bf16 %v172
    %v189 = vunpack.c.l.bf16 %v173
    %v190 = vunpack.c.l.bf16 %v174
    %v191 = vunpack.c.l.bf16 %v175
    %v192 = vunpack.c.l.bf16 %v176
    %v193 = vunpack.c.l.bf16 %v177
    %v194 = vunpack.c.l.bf16 %v178
    %v195 = vunpack.c.l.bf16 %v179
    %v196 = vunpack.c.l.bf16 %v180
    %v197 = vunpack.c.l.bf16 %v181
    %v198 = vunpack.c.l.bf16 %v182
    %v199 = vunpack.c.l.bf16 %v183
    %v200 = vunpack.c.l.bf16 %v184
    %v201 = vunpack.c.l.bf16 %v185
    %v202 = vunpack.c.l.bf16 %v186
    %v203 = vunpack.c.l.bf16 %v187
    %v204 = vmul.f32 %v188, 0.20019531
    %v205 = vmul.f32 %v189, 0.20019531
    %v206 = vmul.f32 %v190, 0.20019531
    %v207 = vmul.f32 %v191, 0.20019531
    %v208 = vmul.f32 %v192, 0.20019531
    %v209 = vmul.f32 %v193, 0.20019531
    %v210 = vmul.f32 %v194, 0.20019531
    %v211 = vmul.f32 %v195, 0.20019531
    %v212 = vmul.f32 %v196, 0.20019531
    %v213 = vmul.f32 %v197, 0.20019531
    %v214 = vmul.f32 %v198, 0.20019531
    %v215 = vmul.f32 %v199, 0.20019531
    %v216 = vmul.f32 %v200, 0.20019531
    %v217 = vmul.f32 %v201, 0.20019531
    %v218 = vmul.f32 %v202, 0.20019531
    %v219 = vmul.f32 %v203, 0.20019531
    %v220 = vpack.c.bf16 %v204, %v204
    %v221 = vpack.c.bf16 %v205, %v205
    %v222 = vpack.c.bf16 %v206, %v206
    %v223 = vpack.c.bf16 %v207, %v207
    %v224 = vpack.c.bf16 %v208, %v208
    %v225 = vpack.c.bf16 %v209, %v209
    %v226 = vpack.c.bf16 %v210, %v210
    %v227 = vpack.c.bf16 %v211, %v211
    %v228 = vpack.c.bf16 %v212, %v212
    %v229 = vpack.c.bf16 %v213, %v213
    %v230 = vpack.c.bf16 %v214, %v214
    %v231 = vpack.c.bf16 %v215, %v215
    %v232 = vpack.c.bf16 %v216, %v216
    %v233 = vpack.c.bf16 %v217, %v217
    %v234 = vpack.c.bf16 %v218, %v218
    %v235 = vpack.c.bf16 %v219, %v219
    %v236 = vunpack.c.l.bf16 %v220
    %v237 = vunpack.c.l.bf16 %v221
    %v238 = vunpack.c.l.bf16 %v222
    %v239 = vunpack.c.l.bf16 %v223
    %v240 = vunpack.c.l.bf16 %v224
    %v241 = vunpack.c.l.bf16 %v225
    %v242 = vunpack.c.l.bf16 %v226
    %v243 = vunpack.c.l.bf16 %v227
    %v244 = vunpack.c.l.bf16 %v228
    %v245 = vunpack.c.l.bf16 %v229
    %v246 = vunpack.c.l.bf16 %v230
    %v247 = vunpack.c.l.bf16 %v231
    %v248 = vunpack.c.l.bf16 %v232
    %v249 = vunpack.c.l.bf16 %v233
    %v250 = vunpack.c.l.bf16 %v234
    %v251 = vunpack.c.l.bf16 %v235
    %v252 = vmax.f32 %v188, %v236
    %v253 = vmax.f32 %v189, %v237
    %v254 = vmax.f32 %v190, %v238
    %v255 = vmax.f32 %v191, %v239
    %v256 = vmax.f32 %v192, %v240
    %v257 = vmax.f32 %v193, %v241
    %v258 = vmax.f32 %v194, %v242
    %v259 = vmax.f32 %v195, %v243
    %v260 = vmax.f32 %v196, %v244
    %v261 = vmax.f32 %v197, %v245
    %v262 = vmax.f32 %v198, %v246
    %v263 = vmax.f32 %v199, %v247
    %v264 = vmax.f32 %v200, %v248
    %v265 = vmax.f32 %v201, %v249
    %v266 = vmax.f32 %v202, %v250
    %v267 = vmax.f32 %v203, %v251
    %v268 = vpack.c.bf16 %v253, %v252
    %v269 = vpack.c.bf16 %v255, %v254
    %v270 = vpack.c.bf16 %v257, %v256
    %v271 = vpack.c.bf16 %v259, %v258
    %v272 = vpack.c.bf16 %v261, %v260
    %v273 = vpack.c.bf16 %v263, %v262
    %v274 = vpack.c.bf16 %v265, %v264
    %v275 = vpack.c.bf16 %v267, %v266
    %v276 = vld [vmem:[%s3] sm:$0xf]
    %v277 = vld [vmem:[%s3 + $0x4] sm:$0xf]
    %v278 = vld [vmem:[%s3 + $0x8] sm:$0xf]
    %v279 = vld [vmem:[%s3 + $0xc] sm:$0xf]
    %v280 = vld [vmem:[%s3 + $0x10] sm:$0xf]
    %v281 = vld [vmem:[%s3 + $0x14] sm:$0xf]
    %v282 = vld [vmem:[%s3 + $0x18] sm:$0xf]
    %v283 = vld [vmem:[%s3 + $0x1c] sm:$0xf]
    %v284 = vld [vmem:[%s3 + $0x20] sm:$0xf]
    %v285 = vld [vmem:[%s3 + $0x24] sm:$0xf]
    %v286 = vld [vmem:[%s3 + $0x28] sm:$0xf]
    %v287 = vld [vmem:[%s3 + $0x2c] sm:$0xf]
    %v288 = vld [vmem:[%s3 + $0x30] sm:$0xf]
    %v289 = vld [vmem:[%s3 + $0x34] sm:$0xf]
    %v290 = vld [vmem:[%s3 + $0x38] sm:$0xf]
    %v291 = vld [vmem:[%s3 + $0x3c] sm:$0xf]
    %v292 = vld [vmem:[%s4] sm:$0x1]
    %v294 = vperm.slane %v292, 0
    %v312 = vunpack.c.l.b16 %v276
    %v313 = vunpack.c.l.b16 %v277
    %v314 = vunpack.c.l.b16 %v278
    %v315 = vunpack.c.l.b16 %v279
    %v316 = vunpack.c.l.b16 %v280
    %v317 = vunpack.c.l.b16 %v281
    %v318 = vunpack.c.l.b16 %v282
    %v319 = vunpack.c.l.b16 %v283
    %v320 = vunpack.c.l.b16 %v284
    %v321 = vunpack.c.l.b16 %v285
    %v322 = vunpack.c.l.b16 %v286
    %v323 = vunpack.c.l.b16 %v287
    %v324 = vunpack.c.l.b16 %v288
    %v325 = vunpack.c.l.b16 %v289
    %v326 = vunpack.c.l.b16 %v290
    %v327 = vunpack.c.l.b16 %v291
    %v328 = vpack.c.b16 %v313, %v312
    %v329 = vpack.c.b16 %v315, %v314
    %v330 = vpack.c.b16 %v317, %v316
    %v331 = vpack.c.b16 %v319, %v318
    %v332 = vpack.c.b16 %v321, %v320
    %v333 = vpack.c.b16 %v323, %v322
    %v334 = vpack.c.b16 %v325, %v324
    %v335 = vpack.c.b16 %v327, %v326
    %344 = vmatpush.bf16.msra.mxu0 %v335
    %345 = vmatpush.bf16.msra.mxu0 %v334
    %346 = vmatpush.bf16.msra.mxu0 %v333
    %347 = vmatpush.bf16.msra.mxu0 %v332
    %348 = vmatpush.bf16.msra.mxu0 %v331
    %349 = vmatpush.bf16.msra.mxu0 %v330
    %350 = vmatpush.bf16.msra.mxu0 %v329
    %351 = vmatpush.bf16.msra.mxu0 %v328
    %352 = vmatmul.bf16.gmra.mxu0 %v268
    %v353 = vpop.f32.mrf.mxu0
    %v354 = vadd.f32 %v294, %v353
    %v355 = vpop.f32.mrf.mxu0
    %v356 = vadd.f32 %v294, %v355
    %357 = vmatmul.bf16.gmra.mxu0 %v269
    %v358 = vpop.f32.mrf.mxu0
    %v359 = vadd.f32 %v294, %v358
    %v360 = vpop.f32.mrf.mxu0
    %v361 = vadd.f32 %v294, %v360
    %362 = vmatmul.bf16.gmra.mxu0 %v270
    %v363 = vpop.f32.mrf.mxu0
    %v364 = vadd.f32 %v294, %v363
    %v365 = vpop.f32.mrf.mxu0
    %v366 = vadd.f32 %v294, %v365
    %367 = vmatmul.bf16.gmra.mxu0 %v271
    %v368 = vpop.f32.mrf.mxu0
    %v369 = vadd.f32 %v294, %v368
    %v370 = vpop.f32.mrf.mxu0
    %v371 = vadd.f32 %v294, %v370
    %372 = vmatmul.bf16.gmra.mxu0 %v272
    %v373 = vpop.f32.mrf.mxu0
    %v374 = vadd.f32 %v294, %v373
    %v375 = vpop.f32.mrf.mxu0
    %v376 = vadd.f32 %v294, %v375
    %377 = vmatmul.bf16.gmra.mxu0 %v273
    %v378 = vpop.f32.mrf.mxu0
    %v379 = vadd.f32 %v294, %v378
    %v380 = vpop.f32.mrf.mxu0
    %v381 = vadd.f32 %v294, %v380
    %382 = vmatmul.bf16.gmra.mxu0 %v274
    %v383 = vpop.f32.mrf.mxu0
    %v384 = vadd.f32 %v294, %v383
    %v385 = vpop.f32.mrf.mxu0
    %v386 = vadd.f32 %v294, %v385
    %387 = vmatmul.bf16.gmra.mxu0 %v275
    %v388 = vpop.f32.mrf.mxu0
    %v389 = vadd.f32 %v294, %v388
    %v390 = vpop.f32.mrf.mxu0
    %v391 = vadd.f32 %v294, %v390
    %392 = vdwg.mxu0
    %v393 = vpack.c.bf16 %v354, %v354
    %v394 = vpack.c.bf16 %v356, %v356
    %v395 = vpack.c.bf16 %v359, %v359
    %v396 = vpack.c.bf16 %v361, %v361
    %v397 = vpack.c.bf16 %v364, %v364
    %v398 = vpack.c.bf16 %v366, %v366
    %v399 = vpack.c.bf16 %v369, %v369
    %v400 = vpack.c.bf16 %v371, %v371
    %v401 = vpack.c.bf16 %v374, %v374
    %v402 = vpack.c.bf16 %v376, %v376
    %v403 = vpack.c.bf16 %v379, %v379
    %v404 = vpack.c.bf16 %v381, %v381
    %v405 = vpack.c.bf16 %v384, %v384
    %v406 = vpack.c.bf16 %v386, %v386
    %v407 = vpack.c.bf16 %v389, %v389
    %v408 = vpack.c.bf16 %v391, %v391
    %v409 = vunpack.c.l.bf16 %v393
    %v410 = vunpack.c.l.bf16 %v394
    %v411 = vunpack.c.l.bf16 %v395
    %v412 = vunpack.c.l.bf16 %v396
    %v413 = vunpack.c.l.bf16 %v397
    %v414 = vunpack.c.l.bf16 %v398
    %v415 = vunpack.c.l.bf16 %v399
    %v416 = vunpack.c.l.bf16 %v400
    %v417 = vunpack.c.l.bf16 %v401
    %v418 = vunpack.c.l.bf16 %v402
    %v419 = vunpack.c.l.bf16 %v403
    %v420 = vunpack.c.l.bf16 %v404
    %v421 = vunpack.c.l.bf16 %v405
    %v422 = vunpack.c.l.bf16 %v406
    %v423 = vunpack.c.l.bf16 %v407
    %v424 = vunpack.c.l.bf16 %v408
    %v425 = vmul.f32 %v409, 0.20019531
    %v426 = vmul.f32 %v410, 0.20019531
    %v427 = vmul.f32 %v411, 0.20019531
    %v428 = vmul.f32 %v412, 0.20019531
    %v429 = vmul.f32 %v413, 0.20019531
    %v430 = vmul.f32 %v414, 0.20019531
    %v431 = vmul.f32 %v415, 0.20019531
    %v432 = vmul.f32 %v416, 0.20019531
    %v433 = vmul.f32 %v417, 0.20019531
    %v434 = vmul.f32 %v418, 0.20019531
    %v435 = vmul.f32 %v419, 0.20019531
    %v436 = vmul.f32 %v420, 0.20019531
    %v437 = vmul.f32 %v421, 0.20019531
    %v438 = vmul.f32 %v422, 0.20019531
    %v439 = vmul.f32 %v423, 0.20019531
    %v440 = vmul.f32 %v424, 0.20019531
    %v441 = vpack.c.bf16 %v425, %v425
    %v442 = vpack.c.bf16 %v426, %v426
    %v443 = vpack.c.bf16 %v427, %v427
    %v444 = vpack.c.bf16 %v428, %v428
    %v445 = vpack.c.bf16 %v429, %v429
    %v446 = vpack.c.bf16 %v430, %v430
    %v447 = vpack.c.bf16 %v431, %v431
    %v448 = vpack.c.bf16 %v432, %v432
    %v449 = vpack.c.bf16 %v433, %v433
    %v450 = vpack.c.bf16 %v434, %v434
    %v451 = vpack.c.bf16 %v435, %v435
    %v452 = vpack.c.bf16 %v436, %v436
    %v453 = vpack.c.bf16 %v437, %v437
    %v454 = vpack.c.bf16 %v438, %v438
    %v455 = vpack.c.bf16 %v439, %v439
    %v456 = vpack.c.bf16 %v440, %v440
    %v457 = vunpack.c.l.bf16 %v441
    %v458 = vunpack.c.l.bf16 %v442
    %v459 = vunpack.c.l.bf16 %v443
    %v460 = vunpack.c.l.bf16 %v444
    %v461 = vunpack.c.l.bf16 %v445
    %v462 = vunpack.c.l.bf16 %v446
    %v463 = vunpack.c.l.bf16 %v447
    %v464 = vunpack.c.l.bf16 %v448
    %v465 = vunpack.c.l.bf16 %v449
    %v466 = vunpack.c.l.bf16 %v450
    %v467 = vunpack.c.l.bf16 %v451
    %v468 = vunpack.c.l.bf16 %v452
    %v469 = vunpack.c.l.bf16 %v453
    %v470 = vunpack.c.l.bf16 %v454
    %v471 = vunpack.c.l.bf16 %v455
    %v472 = vunpack.c.l.bf16 %v456
    %v473 = vmax.f32 %v409, %v457
    %v474 = vmax.f32 %v410, %v458
    %v475 = vmax.f32 %v411, %v459
    %v476 = vmax.f32 %v412, %v460
    %v477 = vmax.f32 %v413, %v461
    %v478 = vmax.f32 %v414, %v462
    %v479 = vmax.f32 %v415, %v463
    %v480 = vmax.f32 %v416, %v464
    %v481 = vmax.f32 %v417, %v465
    %v482 = vmax.f32 %v418, %v466
    %v483 = vmax.f32 %v419, %v467
    %v484 = vmax.f32 %v420, %v468
    %v485 = vmax.f32 %v421, %v469
    %v486 = vmax.f32 %v422, %v470
    %v487 = vmax.f32 %v423, %v471
    %v488 = vmax.f32 %v424, %v472
    %v489 = vpack.c.bf16 %v474, %v473
    %v490 = vpack.c.bf16 %v476, %v475
    %v491 = vpack.c.bf16 %v478, %v477
    %v492 = vpack.c.bf16 %v480, %v479
    %v493 = vpack.c.bf16 %v482, %v481
    %v494 = vpack.c.bf16 %v484, %v483
    %v495 = vpack.c.bf16 %v486, %v485
    %v496 = vpack.c.bf16 %v488, %v487
    %v497 = vld [vmem:[%s5] sm:$0x1]
    %v498 = vld [vmem:[#allocation2] sm:$0x1]
    %500 = vset.pattern.permute.xlu0 0
    %501 = vperm.xlu0 %500, %v498
    %v502 = vpop.permute.xlu0 %501
    %v504 = vperm.slane %v502, 0
    %505 = vmatpush.bf16.xpose.msra.mxu0 %v496
    %506 = vmatpush.bf16.xpose.msra.mxu0 %v495
    %507 = vmatpush.bf16.xpose.msra.mxu0 %v494
    %508 = vmatpush.bf16.xpose.msra.mxu0 %v493
    %509 = vmatpush.bf16.xpose.msra.mxu0 %v492
    %510 = vmatpush.bf16.xpose.msra.mxu0 %v491
    %511 = vmatpush.bf16.xpose.msra.mxu0 %v490
    %512 = vmatpush.bf16.xpose.msra.mxu0 %v489
    %513 = vmatmul.bf16.gmra.mxu0 %v497
    %v514 = vpop.f32.mrf.mxu0
    %v515 = vadd.f32 %v504, %v514
    %v516 = vpop.f32.mrf.mxu0
    %517 = vdwg.mxu0
    %v518 = vsub.f32 0.0, %v515
    %v519 = vmul.f32 %v518, 1.442695
    %v520 = vpow.pop %v519
    %v521 = vadd.f32 %v520, 1.0
    %v522 = vrcp.pop %v521
    %v523 = vmul.f32 %v521, %v522
    %v524 = vsub.f32 1.0, %v523
    %v525 = vmul.f32 %v522, %v524
    %v526 = vadd.f32 %v522, %v525
    %vm527 = vweird.f32 %v521
    %vm528 = vweird.f32 %v522
    %vm529 = vmor %vm527, %vm528
    %v530 = vsel %vm529, %v522, %v526
    %v531 = vand.u32 2147483647, %v521
    %vm532 = vcmp.eq.f32.partialorder %v531, 8.507059e+37
    %v533 = vand.u32 %v521, 2147483648
    %v534 = vor.u32 1.1754944e-38, %v533
    %v535 = vsel %vm532, %v534, %v530
    %v536 = vmul.f32 1.0, %v535
    %537 = vst [vmem:[#allocation3] sm:$0x1] %v536
    // Predicated region
    $region30: #{tpu_custom_call.1} parent=1 // pred_check
      _
    $region31: #{tpu_custom_call.1} parent=1 // pred_check_branch
      %539 = sbr.rel (0) target = $region33
    $region32: #{tpu_custom_call.1} parent=1 // pred_region
      %541 = vsyncadd [#allocation4], 0
      %s543 = sshll.u32 [#allocation3], 4
      %s544 = int_to_ptr.vmem [resolvable:$true] %s543
      %s545 = sshll.u32 %s7, 4
      %s546 = int_to_ptr.hbm [resolvable:$true] %s545
      %548 = dma.vmem_to_hbm [thread:$0]  %s544, 16, %s546, [#allocation4]
    $region33: #{tpu_custom_call.1} parent=1 // pred_fallthru
      _
    // Predicated region
    $region34: #{tpu_custom_call.1} parent=1 // pred_check
      _
    $region35: #{tpu_custom_call.1} parent=1 // pred_check_branch
      %550 = sbr.rel (0) target = $region37
    $region36: #{tpu_custom_call.1} parent=1 // pred_region
      %552 = dma.done [#allocation4], 16
    $region37: #{tpu_custom_call.1} parent=1 // pred_fallthru
      _
    %553 = vsyncpa [#allocation4], 1

</llo_original>
